<compile_context>
chip_gen: v7x
topology: tpu7x:2x2x1
jax: 0.10.0
libtpu: 0.0.40
codegen_flags: <defaults>
</compile_context>

<pallas_src>
import functools
import math

import jax
import jax.numpy as jnp
from jax.experimental import pallas as pl
from jax.experimental.pallas import tpu as pltpu


_PER_BUFFER_BUDGET = 2 * 1024 * 1024   # target bytes per VMEM buffer (mem-bound: ~roofline)
_MIN_BUFFER_BYTES = 512 * 1024         # don't shrink below this while chasing >=4 steps
_VMEM_HEADROOM = 8 * 1024 * 1024
_VMEM_LIMIT_CAP = 48 * 1024 * 1024     # stays under v7x's 64 MiB per-TC physical VMEM


def _has_native_bf16_math() -> bool:
    """bf16 VPU/EUP exists on v6e and newer; v5e and older need f32 math."""
    try:
        kind = jax.devices()[0].device_kind.lower()
    except Exception:
        return False
    if "tpu" not in kind:
        return False
    return not any(v in kind for v in ("v2", "v3", "v4", "v5"))


def _round_up(n: int, m: int) -> int:
    return ((n + m - 1) // m) * m


def _pick_tile_rows(n_rows: int, row_bytes: int, sub: int) -> int:
    """Largest sublane-multiple row tile within ~2 MiB per buffer, then shrink
    for >=2 grid steps (v7x megacore) and prefer >=4 steps (pipeline steady
    state) as long as each buffer stays >= ~512 KiB."""
    cap = max(1, _PER_BUFFER_BUDGET // max(1, row_bytes))
    tile_r = max(sub, (cap // sub) * sub)
    tile_r = min(tile_r, _round_up(n_rows, sub))

    def steps(t):
        return -(-n_rows // t)

    while tile_r > sub:
        s = steps(tile_r)
        if s >= 4:
            break
        cand = max(sub, ((tile_r // 2) // sub) * sub)
        if cand == tile_r:
            break
        # Always shrink to reach >=2 steps; only shrink further (toward 4) if
        # the buffer stays reasonably large.
        if s >= 2 and cand * row_bytes < _MIN_BUFFER_BYTES:
            break
        tile_r = cand
    return tile_r


def _glu_split_kernel(a_ref, b_ref, o_ref, *, compute_dtype):
    # Halves already separated by the BlockSpec DMA; pure VPU/EUP work.
    a = a_ref[...].astype(compute_dtype)
    g = b_ref[...].astype(compute_dtype)
    o_ref[...] = (a * jax.nn.sigmoid(g)).astype(o_ref.dtype)


def _glu_fused_kernel(x_ref, o_ref, *, hw, compute_dtype):
    # Fallback when the half-width is not 128-lane aligned: load the full-width
    # tile and slice in-register (static slices).
    x = x_ref[...]
    a = x[:, :hw].astype(compute_dtype)
    g = x[:, hw:].astype(compute_dtype)
    o_ref[...] = (a * jax.nn.sigmoid(g)).astype(o_ref.dtype)


@functools.partial(jax.jit, static_argnames=("dim",))
def glu_pallas(x, dim: int = -1):
    ndim = x.ndim
    dim = dim % ndim
    c = x.shape[dim]
    if c % 2 != 0:
        raise ValueError("GLU requires the split dimension to be even")
    h = c // 2

    pre = math.prod(x.shape[:dim])
    post = math.prod(x.shape[dim + 1:])
    out_shape = x.shape[:dim] + (h,) + x.shape[dim + 1:]

    # Lane-dense 2D view: [rows, 2*hw]; halves are lanes [0, hw) and [hw, 2*hw).
    rows = pre
    hw = h * post
    cw = 2 * hw

    itemsize = jnp.dtype(x.dtype).itemsize
    sub = max(8, 32 // itemsize)  # sublane multiple: 8 f32 / 16 bf16 / 32 int8

    if x.dtype == jnp.bfloat16 and _has_native_bf16_math():
        compute_dtype = jnp.bfloat16  # v6e/v7x: bf16-native VPU/EUP
    else:
        compute_dtype = jnp.float32   # v5e and others: keep f32 math

    # Shapes where a Pallas block would be lane-padded / masked-store dominated,
    # or too small/too wide for a sane tile: let XLA's fused elementwise handle.
    too_narrow = (hw % 128 != 0) and (cw < 256)
    too_few_rows = rows < sub
    too_wide = 6 * sub * hw * itemsize > 40 * 1024 * 1024
    if too_narrow or too_few_rows or too_wide:
        a, g = jnp.split(x, 2, axis=dim)
        return (a * jax.nn.sigmoid(g)).astype(x.dtype)

    x2d = x.reshape(rows, cw)
    n_out = rows * hw
    cost = pl.CostEstimate(flops=4 * n_out, transcendentals=n_out,
                           bytes_accessed=3 * n_out * itemsize)

    if hw % 128 == 0:
        # Split in the DMA: pass x2d twice, fetch lane-aligned half-width blocks.
        row_bytes = hw * itemsize
        tile_r = _pick_tile_rows(rows, row_bytes, sub)
        peak_vmem = 6 * tile_r * row_bytes  # (2 in + 1 out) x double-buffered
        cparams = pltpu.CompilerParams(
            dimension_semantics=("parallel",),
            vmem_limit_bytes=min(_VMEM_LIMIT_CAP,
                                 max(24 * 1024 * 1024, peak_vmem + _VMEM_HEADROOM)))
        out = pl.pallas_call(
            functools.partial(_glu_split_kernel, compute_dtype=compute_dtype),
            out_shape=jax.ShapeDtypeStruct((rows, hw), x.dtype),
            grid=(pl.cdiv(rows, tile_r),),
            in_specs=[pl.BlockSpec((tile_r, hw), lambda i: (i, 0)),
                      pl.BlockSpec((tile_r, hw), lambda i: (i, 1))],
            out_specs=pl.BlockSpec((tile_r, hw), lambda i: (i, 0)),
            compiler_params=cparams,
            cost_estimate=cost,
        )(x2d, x2d)
    else:
        # Half width not lane-aligned: fetch the full-width row block, slice inside.
        row_bytes = cw * itemsize
        tile_r = _pick_tile_rows(rows, row_bytes, sub)
        peak_vmem = 2 * tile_r * (cw + hw) * itemsize
        cparams = pltpu.CompilerParams(
            dimension_semantics=("parallel",),
            vmem_limit_bytes=min(_VMEM_LIMIT_CAP,
                                 max(24 * 1024 * 1024, peak_vmem + _VMEM_HEADROOM)))
        out = pl.pallas_call(
            functools.partial(_glu_fused_kernel, hw=hw, compute_dtype=compute_dtype),
            out_shape=jax.ShapeDtypeStruct((rows, hw), x.dtype),
            grid=(pl.cdiv(rows, tile_r),),
            in_specs=[pl.BlockSpec((tile_r, cw), lambda i: (i, 0))],
            out_specs=pl.BlockSpec((tile_r, hw), lambda i: (i, 0)),
            compiler_params=cparams,
            cost_estimate=cost,
        )(x2d)

    return out.reshape(out_shape)


def glu_reference(x, dim: int = -1):
    outputs, gate = jnp.split(x, 2, axis=dim)
    return outputs * jax.nn.sigmoid(gate)


if __name__ == "__main__":
    keys = jax.random.split(jax.random.PRNGKey(0), 5)

    # 1) Lane-aligned hidden (H=128) -> DMA-split Pallas path (two half blocks).
    x1 = jax.random.normal(keys[0], (2, 8, 256), dtype=jnp.float32)
    y1 = glu_pallas(x1, dim=-1)
    jax.block_until_ready(y1)
    assert y1.shape == (2, 8, 128), y1.shape
    assert jnp.allclose(y1, glu_reference(x1, dim=-1), atol=1e-5, rtol=1e-5)

    # 2) Tiny hidden (H=16): sub-128 lane width -> XLA elementwise fallback.
    x2 = jax.random.normal(keys[1], (2, 8, 32), dtype=jnp.float32)
    y2 = glu_pallas(x2, dim=-1)
    jax.block_until_ready(y2)
    assert y2.shape == (2, 8, 16), y2.shape
    assert jnp.allclose(y2, glu_reference(x2, dim=-1), atol=1e-5, rtol=1e-5)

    # 3) GLU over a non-minor dim (dim=1): collapsed lane-dense view makes the
    #    halves contiguous lane slices -> DMA-split Pallas path, no transpose.
    x3 = jax.random.normal(keys[2], (8, 32, 128), dtype=jnp.float32)
    y3 = glu_pallas(x3, dim=1)
    jax.block_until_ready(y3)
    assert y3.shape == (8, 16, 128), y3.shape
    assert jnp.allclose(y3, glu_reference(x3, dim=1), atol=1e-5, rtol=1e-5)

    # 4) Half width 192 (not 128-aligned, full width >= 256) -> fused in-kernel slice path.
    x4 = jax.random.normal(keys[3], (2, 8, 384), dtype=jnp.float32)
    y4 = glu_pallas(x4, dim=-1)
    jax.block_until_ready(y4)
    assert y4.shape == (2, 8, 192), y4.shape
    assert jnp.allclose(y4, glu_reference(x4, dim=-1), atol=1e-5, rtol=1e-5)

    # 5) bf16 input, lane-aligned -> DMA-split path with generation-aware math dtype.
    x5 = jax.random.normal(keys[4], (4, 8, 256), dtype=jnp.bfloat16)
    y5 = glu_pallas(x5, dim=-1)
    jax.block_until_ready(y5)
    assert y5.shape == (4, 8, 128), y5.shape
    assert jnp.allclose(y5.astype(jnp.float32),
                        glu_reference(x5, dim=-1).astype(jnp.float32),
                        atol=2e-2, rtol=2e-2)

    print("KERNEL_OK")
</pallas_src>

<mosaic_0001>
module attributes {stable_mosaic.version = 11 : i64} {
  func.func @_glu_split_kernel(%arg0: i32, %arg1: memref<8x128xf32, #tpu.memory_space<vmem>>, %arg2: memref<8x128xf32, #tpu.memory_space<vmem>>, %arg3: memref<8x128xf32, #tpu.memory_space<vmem>>) attributes {dimension_semantics = [#tpu.dimension_semantics<parallel>], iteration_bounds = array<i64: 2>, scalar_prefetch = 0 : i64, scratch_operands = 0 : i64, tpu.core_type = #tpu.core_type<tc>, window_params = [{transform_indices = @transform_0, window_bounds = array<i64: 8, 128>}, {transform_indices = @transform_1, window_bounds = array<i64: 8, 128>}, {transform_indices = @transform_2, window_bounds = array<i64: 8, 128>}]} {
    %c0 = arith.constant 0 : index
    %c0_0 = arith.constant 0 : index
    %0 = vector.load %arg1[%c0, %c0_0] : memref<8x128xf32, #tpu.memory_space<vmem>>, vector<8x128xf32>
    %c0_1 = arith.constant 0 : index
    %c0_2 = arith.constant 0 : index
    %1 = vector.load %arg2[%c0_1, %c0_2] : memref<8x128xf32, #tpu.memory_space<vmem>>, vector<8x128xf32>
    %2 = arith.negf %1 : vector<8x128xf32>
    %3 = math.exp %2 : vector<8x128xf32>
    %cst = arith.constant 1.000000e+00 : f32
    %4 = vector.broadcast %cst : f32 to vector<8x128xf32>
    %5 = arith.addf %4, %3 : vector<8x128xf32>
    %6 = arith.divf %4, %5 : vector<8x128xf32>
    %7 = arith.mulf %0, %6 : vector<8x128xf32>
    %c0_3 = arith.constant 0 : index
    %c0_4 = arith.constant 0 : index
    %8 = vector.load %arg3[%c0_3, %c0_4] : memref<8x128xf32, #tpu.memory_space<vmem>>, vector<8x128xf32>
    tpu.vector_store %arg3[%c0_3, %c0_4], %7 {strides = array<i32>} : memref<8x128xf32, #tpu.memory_space<vmem>>, vector<8x128xf32>,
    return
  }
  func.func @transform_0(%arg0: i32) -> (i32, i32) {
    %c0_i32 = arith.constant 0 : i32
    %c0_i32_0 = arith.constant 0 : i32
    return %arg0, %c0_i32 : i32, i32
  }
  func.func @transform_1(%arg0: i32) -> (i32, i32) {
    %c1_i32 = arith.constant 1 : i32
    %c0_i32 = arith.constant 0 : i32
    return %arg0, %c1_i32 : i32, i32
  }
  func.func @transform_2(%arg0: i32) -> (i32, i32) {
    %c0_i32 = arith.constant 0 : i32
    %c0_i32_0 = arith.constant 0 : i32
    return %arg0, %c0_i32 : i32, i32
  }
}

</mosaic_0001>

<llo_original>
// kernel: glu_pallas.1
$region0: #{glu_pallas.1}
  #allocation0 [shape = 'u32[]', space=smem, size = 0x4, offset = 0x4, fixed_abs, tag = 'smem constant byte address 0x4 - core index']
  #allocation1 [shape = 'u32[144,128]{1,0:T(1,128)}', space=vmem, size = 0x12000, scoped, tag = 'internal scratch']
  %s0 = inlined_call_operand.hbm [shape: f32[16,256], index: 0, kind: input, shape index: {}, may-alias: {0,1}]
  %s1 = inlined_call_operand.hbm [shape: f32[16,256], index: 1, kind: input, shape index: {}, may-alias: {0,1}]
  %s2 = inlined_call_operand.hbm [shape: f32[16,128], index: 2, kind: output, shape index: {}]
  %s3 = sld [smem:[#allocation0]]
  $region49: #{glu_pallas.1} parent=0
    _
  %s5 = ssub.s32 1, %s3
  %s6 = scalar_select 0, %s5, %s3
  $region1: #{glu_pallas.1} parent=0
    #allocation2 [shape = 'u8[8192]{0}', space=vmem, size = 0x2000, scoped, tag = 'input window, operand 0']
    #allocation3 [shape = 's32[2]{0}', space=sflag, size = 0x8, scoped, tag = 'scoped memory for glu_pallas.1']
    #allocation4 [shape = 's32[2]{0}', space=sflag, size = 0x8, scoped, tag = 'scoped memory for glu_pallas.1']
    #allocation5 [shape = 'u8[8192]{0}', space=vmem, size = 0x2000, scoped, tag = 'input window, operand 1']
    #allocation6 [shape = 's32[2]{0}', space=sflag, size = 0x8, scoped, tag = 'scoped memory for glu_pallas.1']
    #allocation7 [shape = 'u8[8192]{0}', space=vmem, size = 0x2000, scoped, tag = 'output window, operand 0']
    %7 = vsyncpa [#allocation3], 0
    %s8 = scalar_lea.sflag [#allocation3], 1
    %9 = vsyncpa %s8, 0
    %10 = vsyncpa [#allocation6], 0
    %s11 = scalar_lea.sflag [#allocation6], 1
    %12 = vsyncpa %s11, 0
    %13 = vsyncpa [#allocation4], 0
    %s14 = scalar_lea.sflag [#allocation4], 1
    %15 = vsyncpa %s14, 0
    loop: start=0, step=1, limit=4
    $region2: #{glu_pallas.1} parent=1 // loop_pre_header
      _
    $region3: #{glu_pallas.1} parent=1 // loop_header
      %s17 = sphi 0, %s21
      %p18 = scmp.ge.s32.totalorder %s17, 4
      %s27 = sphi 0, %s29
      %s30 = sphi 0, %s27
      %s31 = sphi 0, %s30
      %s47 = sphi 0, %s31
      %s53 = sphi 0, %s55
      %s56 = sphi 0, %s53
      %s57 = sphi 0, %s56
      %s73 = sphi 0, %s57
      %s79 = sphi 0, %s81
      %s82 = sphi 0, %s79
      %s83 = sphi 0, %s82
      %s99 = sphi 0, %s83
    $region4: #{glu_pallas.1} parent=1 // loop_header_branch
      %20 = sbr.rel (%p18) target = $region8
    $region5: #{glu_pallas.1} parent=1 // loop_body
      %s22 = ssub.s32 %s17, 1
      %s23 = ssub.s32 %s17, 2
      %s24 = sadd.s32 %s17, 1
      %s25 = ssub.s32 %s17, %s24
      %p26 = scmp.eq.s32.totalorder %s25, 0
      %s28 = sadd.s32 %s27, 1
      %s29 = scalar_select %p26, %s27, %s28
      %p32 = pneg %p26
      %p33 = scmp.eq.s32.totalorder %s17, 1
      %p34 = por %p32, %p33
      %p35 = scmp.ne.s32.totalorder %s27, %s30
      %p36 = scmp.eq.s32.totalorder %s17, 0
      %p37 = por %p35, %p36
      %p38 = scmp.ne.s32.totalorder %s27, %s30
      %p39 = scmp.eq.s32.totalorder %s22, 1
      %p40 = por %p38, %p39
      %p41 = scmp.ne.s32.totalorder %s30, %s31
      %p42 = scmp.eq.s32.totalorder %s22, 0
      %p43 = por %p41, %p42
      %p44 = scmp.ne.s32.totalorder %s30, %s31
      %p45 = scmp.eq.s32.totalorder %s23, 1
      %p46 = por %p44, %p45
      %p48 = scmp.ne.s32.totalorder %s31, %s47
      %p49 = scmp.eq.s32.totalorder %s23, 0
      %p50 = por %p48, %p49
      %s51 = ssub.s32 %s17, %s24
      %p52 = scmp.eq.s32.totalorder %s51, 0
      %s54 = sadd.s32 %s53, 1
      %s55 = scalar_select %p52, %s53, %s54
      %p58 = pneg %p52
      %p59 = scmp.eq.s32.totalorder %s17, 1
      %p60 = por %p58, %p59
      %p61 = scmp.ne.s32.totalorder %s53, %s56
      %p62 = scmp.eq.s32.totalorder %s17, 0
      %p63 = por %p61, %p62
      %p64 = scmp.ne.s32.totalorder %s53, %s56
      %p65 = scmp.eq.s32.totalorder %s22, 1
      %p66 = por %p64, %p65
      %p67 = scmp.ne.s32.totalorder %s56, %s57
      %p68 = scmp.eq.s32.totalorder %s22, 0
      %p69 = por %p67, %p68
      %p70 = scmp.ne.s32.totalorder %s56, %s57
      %p71 = scmp.eq.s32.totalorder %s23, 1
      %p72 = por %p70, %p71
      %p74 = scmp.ne.s32.totalorder %s57, %s73
      %p75 = scmp.eq.s32.totalorder %s23, 0
      %p76 = por %p74, %p75
      %s77 = ssub.s32 %s17, %s24
      %p78 = scmp.eq.s32.totalorder %s77, 0
      %s80 = sadd.s32 %s79, 1
      %s81 = scalar_select %p78, %s79, %s80
      %p84 = pneg %p78
      %p85 = scmp.eq.s32.totalorder %s17, 1
      %p86 = por %p84, %p85
      %p87 = scmp.ne.s32.totalorder %s79, %s82
      %p88 = scmp.eq.s32.totalorder %s17, 0
      %p89 = por %p87, %p88
      %p90 = scmp.ne.s32.totalorder %s79, %s82
      %p91 = scmp.eq.s32.totalorder %s22, 1
      %p92 = por %p90, %p91
      %p93 = scmp.ne.s32.totalorder %s82, %s83
      %p94 = scmp.eq.s32.totalorder %s22, 0
      %p95 = por %p93, %p94
      %p96 = scmp.ne.s32.totalorder %s82, %s83
      %p97 = scmp.eq.s32.totalorder %s23, 1
      %p98 = por %p96, %p97
      %p100 = scmp.ne.s32.totalorder %s83, %s99
      %p101 = scmp.eq.s32.totalorder %s23, 0
      %p102 = por %p100, %p101
      %p103 = scmp.le.s32.totalorder 1, %s17
      %p104 = scmp.lt.s32.totalorder %s17, 3
      %p105 = pnand %p103, %p104
      %p106 = pneg %p105
      // Predicated region
      $region9: #{glu_pallas.1} parent=5 // pred_check
        _
      $region10: #{glu_pallas.1} parent=5 // pred_check_branch
        %108 = sbr.rel (%p105) target = $region12
      $region11: #{glu_pallas.1} parent=5 // pred_region
        %s109 = ssub.s32 %s17, 1
      $region12: #{glu_pallas.1} parent=5 // pred_fallthru
        _
      %p110 = scmp.lt.s32.totalorder %s17, 2
      // Predicated region
      $region13: #{glu_pallas.1} parent=5 // pred_check
        %p111 = pneg %p110
      $region14: #{glu_pallas.1} parent=5 // pred_check_branch
        %113 = sbr.rel (%p111) target = $region16
      $region15: #{glu_pallas.1} parent=5 // pred_region
        // Predicated region
        $region17: #{glu_pallas.1} parent=15 // pred_check
          %p114 = pneg %p37
        $region18: #{glu_pallas.1} parent=15 // pred_check_branch
          %116 = sbr.rel (%p114) target = $region20
        $region19: #{glu_pallas.1} parent=15 // pred_region
          %s117 = sand.u32 %s27, 1
          %s118 = scalar_lea.sflag [#allocation3], %s117
          %s119 = sand.u32 %s27, 1
          %s120 = smul.addr %s119, 8
          %s121 = scalar_lea.vmem [#allocation2], %s120
          %s123 = ssub.s32 128, 128
          %124 = vsyncadd %s118, %s123
          %s125 = smul.addr %s17, 2
          %s126 = smul.addr %s125, 128
          %s127 = scalar_lea.hbm %s0, %s126
          %s129 = sshll.u32 %s121, 4
          %s130 = int_to_ptr.vmem [resolvable:$true] %s129
          %132 = dma.hbm_to_vmem [thread:$0]  %s127, 128, %s130, %s118
        $region20: #{glu_pallas.1} parent=15 // pred_fallthru
          _
        // Predicated region
        $region21: #{glu_pallas.1} parent=15 // pred_check
          %p133 = pneg %p63
        $region22: #{glu_pallas.1} parent=15 // pred_check_branch
          %135 = sbr.rel (%p133) target = $region24
        $region23: #{glu_pallas.1} parent=15 // pred_region
          %s136 = sand.u32 %s53, 1
          %s137 = scalar_lea.sflag [#allocation6], %s136
          %s138 = sand.u32 %s53, 1
          %s139 = smul.addr %s138, 8
          %s140 = scalar_lea.vmem [#allocation5], %s139
          %s142 = ssub.s32 128, 128
          %143 = vsyncadd %s137, %s142
          %s144 = smul.addr %s17, 2
          %s145 = sadd.s32 1, %s144
          %s146 = smul.addr %s145, 128
          %s147 = scalar_lea.hbm %s1, %s146
          %s149 = sshll.u32 %s140, 4
          %s150 = int_to_ptr.vmem [resolvable:$true] %s149
          %152 = dma.hbm_to_vmem [thread:$0]  %s147, 128, %s150, %s137
        $region24: #{glu_pallas.1} parent=15 // pred_fallthru
          _
      $region16: #{glu_pallas.1} parent=5 // pred_fallthru
        _
      %p153 = scmp.le.s32.totalorder 1, %s17
      %p154 = scmp.lt.s32.totalorder %s17, 3
      %p155 = pnand %p153, %p154
      %p156 = pneg %p155
      // Predicated region
      $region25: #{glu_pallas.1} parent=5 // pred_check
        _
      $region26: #{glu_pallas.1} parent=5 // pred_check_branch
        %158 = sbr.rel (%p155) target = $region28
      $region27: #{glu_pallas.1} parent=5 // pred_region
        %s159 = ssub.s32 %s17, 1
        %s160 = sand.u32 %s30, 1
        %s161 = scalar_lea.sflag [#allocation3], %s160
        %s162 = sand.u32 %s30, 1
        %s163 = smul.addr %s162, 8
        %s164 = scalar_lea.vmem [#allocation2], %s163
        // Predicated region
        $region29: #{glu_pallas.1} parent=27 // pred_check
          %p165 = pneg %p43
        $region30: #{glu_pallas.1} parent=27 // pred_check_branch
          %167 = sbr.rel (%p165) target = $region32
        $region31: #{glu_pallas.1} parent=27 // pred_region
          %168 = dma.done %s161, 128
        $region32: #{glu_pallas.1} parent=27 // pred_fallthru
          _
        %s169 = sand.u32 %s56, 1
        %s170 = scalar_lea.sflag [#allocation6], %s169
        %s171 = sand.u32 %s56, 1
        %s172 = smul.addr %s171, 8
        %s173 = scalar_lea.vmem [#allocation5], %s172
        // Predicated region
        $region33: #{glu_pallas.1} parent=27 // pred_check
          %p174 = pneg %p69
        $region34: #{glu_pallas.1} parent=27 // pred_check_branch
          %176 = sbr.rel (%p174) target = $region36
        $region35: #{glu_pallas.1} parent=27 // pred_region
          %177 = dma.done %s170, 128
        $region36: #{glu_pallas.1} parent=27 // pred_fallthru
          _
        %s178 = sand.u32 %s30, 1
        %s179 = scalar_lea.sflag [#allocation3], %s178
        %s180 = sand.u32 %s30, 1
        %s181 = smul.addr %s180, 8
        %s182 = scalar_lea.vmem [#allocation2], %s181
        %p183 = pneg %p43
        %p184 = pneg %p40
        %s185 = sand.u32 %s56, 1
        %s186 = scalar_lea.sflag [#allocation6], %s185
        %s187 = sand.u32 %s56, 1
        %s188 = smul.addr %s187, 8
        %s189 = scalar_lea.vmem [#allocation5], %s188
        %p190 = pneg %p69
        %p191 = pneg %p66
        %p192 = pneg %p95
        %p193 = pneg %p92
        %s194 = sand.u32 %s82, 1
        %s195 = scalar_lea.sflag [#allocation4], %s194
        %s196 = sand.u32 %s82, 1
        %s197 = smul.addr %s196, 8
        %s198 = scalar_lea.vmem [#allocation7], %s197
        %v199 = vld [vmem:[%s164] sm:$0xff]
        %v200 = vld [vmem:[%s173] sm:$0xff]
        %v201 = vxor.u32 %v200, 2147483648
        %v202 = vmul.f32 %v201, 1.442695
        %v203 = vpow.pop %v202
        %v204 = vadd.f32 %v203, 1.0
        %v205 = vrcp.pop %v204
        %v206 = vmul.f32 1.0, %v205
        %v207 = vmul.f32 %v199, %v206
        %208 = vst [vmem:[%s198] sm:$0xff] %v207
        %s209 = sand.u32 %s82, 1
        %s210 = scalar_lea.sflag [#allocation4], %s209
        %s211 = sand.u32 %s82, 1
        %s212 = smul.addr %s211, 8
        %s213 = scalar_lea.vmem [#allocation7], %s212
        // Predicated region
        $region37: #{glu_pallas.1} parent=27 // pred_check
          %p214 = pneg %p92
        $region38: #{glu_pallas.1} parent=27 // pred_check_branch
          %216 = sbr.rel (%p214) target = $region40
        $region39: #{glu_pallas.1} parent=27 // pred_region
          %s218 = ssub.s32 128, 128
          %219 = vsyncadd %s210, %s218
          %s220 = smul.addr %s22, 128
          %s221 = scalar_lea.hbm %s2, %s220
          %s223 = sshll.u32 %s213, 4
          %s224 = int_to_ptr.vmem [resolvable:$true] %s223
          %226 = dma.vmem_to_hbm [thread:$0]  %s224, 128, %s221, %s210
        $region40: #{glu_pallas.1} parent=27 // pred_fallthru
          _
      $region28: #{glu_pallas.1} parent=5 // pred_fallthru
        _
      %p227 = scmp.le.s32.totalorder 2, %s17
      // Predicated region
      $region41: #{glu_pallas.1} parent=5 // pred_check
        %p228 = pneg %p227
      $region42: #{glu_pallas.1} parent=5 // pred_check_branch
        %230 = sbr.rel (%p228) target = $region44
      $region43: #{glu_pallas.1} parent=5 // pred_region
        %s231 = ssub.s32 %s17, 2
        // Predicated region
        $region45: #{glu_pallas.1} parent=43 // pred_check
          %p232 = pneg %p98
        $region46: #{glu_pallas.1} parent=43 // pred_check_branch
          %234 = sbr.rel (%p232) target = $region48
        $region47: #{glu_pallas.1} parent=43 // pred_region
          %s235 = sand.u32 %s83, 1
          %s236 = scalar_lea.sflag [#allocation4], %s235
          %s237 = sand.u32 %s83, 1
          %s238 = smul.addr %s237, 8
          %s239 = scalar_lea.vmem [#allocation7], %s238
          %240 = dma.done %s236, 128
        $region48: #{glu_pallas.1} parent=43 // pred_fallthru
          _
      $region44: #{glu_pallas.1} parent=5 // pred_fallthru
        _
    $region6: #{glu_pallas.1} parent=1 // loop_footer
      %s21 = sadd.s32 1, %s17
    $region7: #{glu_pallas.1} parent=1 // loop_footer_branch
      %16 = sbr.rel target = $region3
    $region8: #{glu_pallas.1} parent=1 // loop_exit
      _
    %241 = vsyncpa [#allocation3], 1
    %s242 = scalar_lea.sflag [#allocation3], 1
    %243 = vsyncpa %s242, 1
    %244 = vsyncpa [#allocation6], 1
    %s245 = scalar_lea.sflag [#allocation6], 1
    %246 = vsyncpa %s245, 1
    %247 = vsyncpa [#allocation4], 1
    %s248 = scalar_lea.sflag [#allocation4], 1
    %249 = vsyncpa %s248, 1

</llo_original>
